<compile_context>
chip_gen: v6e
topology: v6e:2x2x1
jax: 0.10.0
libtpu: 0.0.40
codegen_flags: <defaults>
</compile_context>

<pallas_src>
import jax
import jax.numpy as jnp
from jax.experimental import pallas as pl
from jax.experimental.pallas import tpu as pltpu


def _fused_ensemble_kernel(x_ref, w1_ref, b1_ref, w2_ref, b2_ref, out_ref):
    # Layer 1: (B, D) @ (D, M*H) -> (B, M*H); bf16 operands, f32 MXU accumulate.
    h = jnp.dot(x_ref[...], w1_ref[...], preferred_element_type=jnp.float32)
    h = jnp.maximum(h + b1_ref[...], 0.0)               # bias + ReLU in f32 (VPU)
    # Layer 2: (B, M*H) @ (M*H, Kp) -> (B, Kp).  W2 is pre-scaled by 1/M and b2
    # is pre-averaged in the wrapper, so this IS the ensemble mean.
    logits = jnp.dot(h.astype(w2_ref.dtype), w2_ref[...],
                     preferred_element_type=jnp.float32)
    out_ref[...] = logits + b2_ref[...]                  # lane-dense (B, Kp) store


def averaging_mnist_neq_forward(x_nchw, w1, b1, w2, b2, *, lane=128):
    """x_nchw: (B, C, H, W) float32.  Ensemble params stacked on a leading
    model axis: w1 (M, D, Hdim), b1 (M, 1, Hdim), w2 (M, Hdim, K), b2 (M, 1, K).
    Returns (B, K) float32 averaged logits."""
    B = x_nchw.shape[0]
    x = x_nchw.reshape(B, -1).astype(jnp.float32)        # matches torch reshape(B, -1)
    M, D, Hdim = w1.shape
    K = w2.shape[-1]
    MH = M * Hdim

    # --- exact ensemble fusion (cheap one-off reshapes, done by XLA) ---
    w1cat = jnp.transpose(w1, (1, 0, 2)).reshape(D, MH)            # (D, M*H)
    b1cat = b1.reshape(1, MH).astype(jnp.float32)                  # (1, M*H)
    w2stk = (w2.reshape(MH, K) * (1.0 / M)).astype(jnp.float32)    # (M*H, K), 1/M folded in
    b2avg = jnp.mean(b2.astype(jnp.float32), axis=0).reshape(1, K) # (1, K)

    # --- lane-dense output: pad the class dim up to a multiple of 128 ---
    Kp = ((K + lane - 1) // lane) * lane
    w2pad = jnp.pad(w2stk, ((0, 0), (0, Kp - K)))
    b2pad = jnp.pad(b2avg, ((0, 0), (0, Kp - K)))

    # --- bf16 operands for the MXU (accumulation stays f32 in-kernel) ---
    x_bf = x.astype(jnp.bfloat16)
    w1_bf = w1cat.astype(jnp.bfloat16)
    w2_bf = w2pad.astype(jnp.bfloat16)

    out_padded = pl.pallas_call(
        _fused_ensemble_kernel,
        out_shape=jax.ShapeDtypeStruct((B, Kp), jnp.float32),
        in_specs=[pl.BlockSpec(memory_space=pltpu.MemorySpace.VMEM)] * 5,
        out_specs=pl.BlockSpec(memory_space=pltpu.MemorySpace.VMEM),
        compiler_params=pltpu.CompilerParams(vmem_limit_bytes=32 * 1024 * 1024),
    )(x_bf, w1_bf, b1cat, w2_bf, b2pad)

    return out_padded[:, :K]


def reference_forward(x_nchw, w1, b1, w2, b2):
    """Pure-JAX f32 reference matching the PyTorch ensemble semantics."""
    B = x_nchw.shape[0]
    x = x_nchw.reshape(B, -1)
    outs = []
    for m in range(w1.shape[0]):
        h = jnp.maximum(x @ w1[m] + b1[m], 0.0)
        outs.append(h @ w2[m] + b2[m])
    return jnp.stack(outs, axis=0).mean(axis=0)


if __name__ == "__main__":
    # Small MNIST-like shapes: batch=8, 1 channel, 16x16 image -> D=256.
    B, C, Himg, Wimg = 8, 1, 16, 16
    D = C * Himg * Wimg
    Hdim = 64          # hidden width of each ensemble member
    K = 10             # number of classes
    M = 4              # num_models in the ensemble

    key = jax.random.PRNGKey(0)
    kx, k1, k2, k3, k4 = jax.random.split(key, 5)

    x = jax.random.normal(kx, (B, C, Himg, Wimg), dtype=jnp.float32)
    w1 = jax.random.normal(k1, (M, D, Hdim), dtype=jnp.float32) * 0.05
    b1 = jax.random.normal(k2, (M, 1, Hdim), dtype=jnp.float32) * 0.05
    w2 = jax.random.normal(k3, (M, Hdim, K), dtype=jnp.float32) * 0.05
    b2 = jax.random.normal(k4, (M, 1, K), dtype=jnp.float32) * 0.05

    out = averaging_mnist_neq_forward(x, w1, b1, w2, b2)
    out = jax.block_until_ready(out)

    ref = reference_forward(x, w1, b1, w2, b2)
    assert out.shape == (B, K), out.shape
    # Looser tolerance than before because the kernel feeds bf16 operands to
    # the MXU (f32 accumulation); observed error is O(1e-2) absolute here.
    assert jnp.allclose(out, ref, atol=5e-2, rtol=5e-2), \
        f"max abs err {jnp.max(jnp.abs(out - ref))}"

    print("KERNEL_OK")
</pallas_src>

<mosaic_0001>
module attributes {stable_mosaic.version = 11 : i64} {
  func.func @_fused_ensemble_kernel(%arg0: memref<8x256xbf16, #tpu.memory_space<vmem>>, %arg1: memref<256x256xbf16, #tpu.memory_space<vmem>>, %arg2: memref<1x256xf32, #tpu.memory_space<vmem>>, %arg3: memref<256x128xbf16, #tpu.memory_space<vmem>>, %arg4: memref<1x128xf32, #tpu.memory_space<vmem>>, %arg5: memref<8x128xf32, #tpu.memory_space<vmem>>) attributes {dimension_semantics = [], scalar_prefetch = 0 : i64, scratch_operands = 0 : i64, tpu.core_type = #tpu.core_type<tc>} {
    %c0 = arith.constant 0 : index
    %c0_0 = arith.constant 0 : index
    %0 = vector.load %arg0[%c0, %c0_0] : memref<8x256xbf16, #tpu.memory_space<vmem>>, vector<8x256xbf16>
    %c0_1 = arith.constant 0 : index
    %c0_2 = arith.constant 0 : index
    %1 = vector.load %arg1[%c0_1, %c0_2] : memref<256x256xbf16, #tpu.memory_space<vmem>>, vector<256x256xbf16>
    %cst = arith.constant dense<0.000000e+00> : vector<8x256xf32>
    %2 = tpu.matmul %0, %1, %cst {dimension_numbers = #tpu.dot_dimension_numbers<[1], [0], [0], [1], [0, 0, 1, 1], [], []>} : vector<8x256xbf16>, vector<256x256xbf16>, vector<8x256xf32> -> vector<8x256xf32>
    %c0_3 = arith.constant 0 : index
    %c0_4 = arith.constant 0 : index
    %3 = vector.load %arg2[%c0_3, %c0_4] : memref<1x256xf32, #tpu.memory_space<vmem>>, vector<1x256xf32>
    %4 = vector.broadcast %3 : vector<1x256xf32> to vector<8x256xf32>
    %5 = arith.addf %2, %4 : vector<8x256xf32>
    %cst_5 = arith.constant 0.000000e+00 : f32
    %6 = vector.broadcast %cst_5 : f32 to vector<8x256xf32>
    %7 = arith.maximumf %5, %6 : vector<8x256xf32>
    %8 = arith.truncf %7 : vector<8x256xf32> to vector<8x256xbf16>
    %c0_6 = arith.constant 0 : index
    %c0_7 = arith.constant 0 : index
    %9 = vector.load %arg3[%c0_6, %c0_7] : memref<256x128xbf16, #tpu.memory_space<vmem>>, vector<256x128xbf16>
    %cst_8 = arith.constant dense<0.000000e+00> : vector<8x128xf32>
    %10 = tpu.matmul %8, %9, %cst_8 {dimension_numbers = #tpu.dot_dimension_numbers<[1], [0], [0], [1], [0, 0, 1, 1], [], []>} : vector<8x256xbf16>, vector<256x128xbf16>, vector<8x128xf32> -> vector<8x128xf32>
    %c0_9 = arith.constant 0 : index
    %c0_10 = arith.constant 0 : index
    %11 = vector.load %arg4[%c0_9, %c0_10] : memref<1x128xf32, #tpu.memory_space<vmem>>, vector<1x128xf32>
    %12 = vector.broadcast %11 : vector<1x128xf32> to vector<8x128xf32>
    %13 = arith.addf %10, %12 : vector<8x128xf32>
    %c0_11 = arith.constant 0 : index
    %c0_12 = arith.constant 0 : index
    %14 = vector.load %arg5[%c0_11, %c0_12] : memref<8x128xf32, #tpu.memory_space<vmem>>, vector<8x128xf32>
    tpu.vector_store %arg5[%c0_11, %c0_12], %13 {strides = array<i32>} : memref<8x128xf32, #tpu.memory_space<vmem>>, vector<8x128xf32>,
    return
  }
}

</mosaic_0001>

<llo_original>
// kernel: tpu_custom_call.1
$region0: #{tpu_custom_call.1}
  #allocation0 [shape = 'u32[]', space=smem, size = 0x4, offset = 0x4, fixed_abs, tag = 'smem constant byte address 0x4 - core index']
  #allocation1 [shape = 'u32[144,128]{1,0:T(1,128)}', space=vmem, size = 0x12000, scoped, tag = 'internal scratch']
  %s0 = inlined_call_operand.hbm [shape: bf16[8,256], index: 0, kind: input, shape index: {}]
  %s1 = inlined_call_operand.hbm [shape: bf16[256,256], index: 1, kind: input, shape index: {}]
  %s2 = inlined_call_operand.vmem [shape: f32[1,256], index: 2, kind: input, shape index: {}]
  %s3 = inlined_call_operand.hbm [shape: bf16[256,128], index: 3, kind: input, shape index: {}]
  %s4 = inlined_call_operand.vmem [shape: f32[1,128], index: 4, kind: input, shape index: {}]
  %s5 = inlined_call_operand.hbm [shape: f32[8,128], index: 5, kind: output, shape index: {}]
  %s6 = sld [smem:[#allocation0]]
  $region42: #{tpu_custom_call.1} parent=0
    _
  %s8 = ssub.s32 1, %s6
  %s9 = scalar_select 0, %s8, %s6
  $region1: #{tpu_custom_call.1} parent=0
    #allocation2 [shape = 'u8[4096]{0}', space=vmem, size = 0x1000, scoped, tag = 'input window, operand 0, single buffered']
    #allocation3 [shape = 's32[1]{0}', space=sflag, size = 0x4, scoped, tag = 'scoped memory for tpu_custom_call.1']
    #allocation4 [shape = 's32[1]{0}', space=sflag, size = 0x4, scoped, tag = 'scoped memory for tpu_custom_call.1']
    #allocation5 [shape = 'u8[131072]{0}', space=vmem, size = 0x20000, scoped, tag = 'input window, operand 1, single buffered']
    #allocation6 [shape = 's32[1]{0}', space=sflag, size = 0x4, scoped, tag = 'scoped memory for tpu_custom_call.1']
    #allocation7 [shape = 'u8[65536]{0}', space=vmem, size = 0x10000, scoped, tag = 'input window, operand 3, single buffered']
    #allocation8 [shape = 'u8[4096]{0}', space=vmem, size = 0x1000, scoped, tag = 'output window, operand 0, single buffered']
    %10 = vsyncpa [#allocation3], 0
    %11 = vsyncpa [#allocation6], 0
    %12 = vsyncpa [#allocation4], 0
    // Predicated region
    $region2: #{tpu_custom_call.1} parent=1 // pred_check
      _
    $region3: #{tpu_custom_call.1} parent=1 // pred_check_branch
      %14 = sbr.rel (0) target = $region5
    $region4: #{tpu_custom_call.1} parent=1 // pred_region
      %s16 = ssub.s32 128, 128
      %17 = vsyncadd [#allocation3], %s16
      %s19 = sshll.u32 [#allocation2], 4
      %s20 = int_to_ptr.vmem [resolvable:$true] %s19
      %22 = dma.hbm_to_vmem [thread:$0]  %s0, 128, %s20, [#allocation3]
    $region5: #{tpu_custom_call.1} parent=1 // pred_fallthru
      _
    // Predicated region
    $region6: #{tpu_custom_call.1} parent=1 // pred_check
      _
    $region7: #{tpu_custom_call.1} parent=1 // pred_check_branch
      %24 = sbr.rel (0) target = $region9
    $region8: #{tpu_custom_call.1} parent=1 // pred_region
      %s26 = ssub.s32 4096, 4096
      %27 = vsyncadd [#allocation6], %s26
      %s28 = sshll.u32 [#allocation5], 4
      %s29 = int_to_ptr.vmem [resolvable:$true] %s28
      %34 = dma.hbm_to_vmem [thread:$0]  %s1, 4096, %s29, [#allocation6], 128, 128, 8
    $region9: #{tpu_custom_call.1} parent=1 // pred_fallthru
      _
    // Predicated region
    $region10: #{tpu_custom_call.1} parent=1 // pred_check
      _
    $region11: #{tpu_custom_call.1} parent=1 // pred_check_branch
      %36 = sbr.rel (0) target = $region13
    $region12: #{tpu_custom_call.1} parent=1 // pred_region
      _
    $region13: #{tpu_custom_call.1} parent=1 // pred_fallthru
      _
    // Predicated region
    $region14: #{tpu_custom_call.1} parent=1 // pred_check
      _
    $region15: #{tpu_custom_call.1} parent=1 // pred_check_branch
      %38 = sbr.rel (0) target = $region17
    $region16: #{tpu_custom_call.1} parent=1 // pred_region
      %s40 = ssub.s32 2048, 2048
      %41 = vsyncadd [#allocation6], %s40
      %s42 = sshll.u32 [#allocation7], 4
      %s43 = int_to_ptr.vmem [resolvable:$true] %s42
      %48 = dma.hbm_to_vmem [thread:$0]  %s3, 2048, %s43, [#allocation6], 64, 64, 4
    $region17: #{tpu_custom_call.1} parent=1 // pred_fallthru
      _
    // Predicated region
    $region18: #{tpu_custom_call.1} parent=1 // pred_check
      _
    $region19: #{tpu_custom_call.1} parent=1 // pred_check_branch
      %50 = sbr.rel (0) target = $region21
    $region20: #{tpu_custom_call.1} parent=1 // pred_region
      _
    $region21: #{tpu_custom_call.1} parent=1 // pred_fallthru
      _
    // Predicated region
    $region22: #{tpu_custom_call.1} parent=1 // pred_check
      _
    $region23: #{tpu_custom_call.1} parent=1 // pred_check_branch
      %52 = sbr.rel (0) target = $region25
    $region24: #{tpu_custom_call.1} parent=1 // pred_region
      %53 = dma.done [#allocation3], 128
    $region25: #{tpu_custom_call.1} parent=1 // pred_fallthru
      _
    // Predicated region
    $region26: #{tpu_custom_call.1} parent=1 // pred_check
      _
    $region27: #{tpu_custom_call.1} parent=1 // pred_check_branch
      %55 = sbr.rel (0) target = $region29
    $region28: #{tpu_custom_call.1} parent=1 // pred_region
      %56 = dma.done [#allocation6], 4096
    $region29: #{tpu_custom_call.1} parent=1 // pred_fallthru
      _
    // Predicated region
    $region30: #{tpu_custom_call.1} parent=1 // pred_check
      _
    $region31: #{tpu_custom_call.1} parent=1 // pred_check_branch
      %58 = sbr.rel (0) target = $region33
    $region32: #{tpu_custom_call.1} parent=1 // pred_region
      %59 = dma.done [#allocation6], 2048
    $region33: #{tpu_custom_call.1} parent=1 // pred_fallthru
      _
    %v61 = vld [vmem:[#allocation2] sm:$0xff]
    %v62 = vld [vmem:[#allocation5] sm:$0xff]
    %v63 = vld [vmem:[#allocation5 + $0x8] sm:$0xff]
    %v64 = vld [vmem:[#allocation5 + $0x10] sm:$0xff]
    %v65 = vld [vmem:[#allocation5 + $0x18] sm:$0xff]
    %v66 = vld [vmem:[#allocation5 + $0x20] sm:$0xff]
    %v67 = vld [vmem:[#allocation5 + $0x28] sm:$0xff]
    %v68 = vld [vmem:[#allocation5 + $0x30] sm:$0xff]
    %v69 = vld [vmem:[#allocation5 + $0x38] sm:$0xff]
    %v70 = vld [vmem:[#allocation5 + $0x40] sm:$0xff]
    %v71 = vld [vmem:[#allocation5 + $0x48] sm:$0xff]
    %v72 = vld [vmem:[#allocation5 + $0x50] sm:$0xff]
    %v73 = vld [vmem:[#allocation5 + $0x58] sm:$0xff]
    %v74 = vld [vmem:[#allocation5 + $0x60] sm:$0xff]
    %v75 = vld [vmem:[#allocation5 + $0x68] sm:$0xff]
    %v76 = vld [vmem:[#allocation5 + $0x70] sm:$0xff]
    %v77 = vld [vmem:[#allocation5 + $0x78] sm:$0xff]
    %v78 = vld [vmem:[#allocation5 + $0x80] sm:$0xff]
    %v79 = vld [vmem:[#allocation5 + $0x88] sm:$0xff]
    %v80 = vld [vmem:[#allocation5 + $0x90] sm:$0xff]
    %v81 = vld [vmem:[#allocation5 + $0x98] sm:$0xff]
    %v82 = vld [vmem:[#allocation5 + $0xa0] sm:$0xff]
    %v83 = vld [vmem:[#allocation5 + $0xa8] sm:$0xff]
    %v84 = vld [vmem:[#allocation5 + $0xb0] sm:$0xff]
    %v85 = vld [vmem:[#allocation5 + $0xb8] sm:$0xff]
    %v86 = vld [vmem:[#allocation5 + $0xc0] sm:$0xff]
    %v87 = vld [vmem:[#allocation5 + $0xc8] sm:$0xff]
    %v88 = vld [vmem:[#allocation5 + $0xd0] sm:$0xff]
    %v89 = vld [vmem:[#allocation5 + $0xd8] sm:$0xff]
    %v90 = vld [vmem:[#allocation5 + $0xe0] sm:$0xff]
    %v91 = vld [vmem:[#allocation5 + $0xe8] sm:$0xff]
    %v92 = vld [vmem:[#allocation5 + $0xf0] sm:$0xff]
    %v93 = vld [vmem:[#allocation5 + $0xf8] sm:$0xff]
    %v94 = vld [vmem:[%s2] sm:$0x3]
    %v96 = vlaneseq
    %v97 = vshrl.u32 %v96, 7
    %v98 = vsub.s32 0, %v97
    %v99 = vrot.slane %v94, %v98
    %v100 = vlaneseq
    %v101 = vshrl.u32 %v100, 7
    %v102 = vsub.s32 1, %v101
    %v103 = vrot.slane %v94, %v102
    %v107 = vunpack.c.l.b16 %v61
    %v108 = vunpack.c.h.b16 %v61
    %v109 = vpack.c.b16 %v107, %v107
    %v110 = vpack.c.b16 %v108, %v108
    %v145 = vunpack.c.l.b16 %v62
    %v146 = vunpack.c.h.b16 %v62
    %v147 = vunpack.c.l.b16 %v63
    %v148 = vunpack.c.h.b16 %v63
    %v149 = vunpack.c.l.b16 %v64
    %v150 = vunpack.c.h.b16 %v64
    %v151 = vunpack.c.l.b16 %v65
    %v152 = vunpack.c.h.b16 %v65
    %v153 = vunpack.c.l.b16 %v66
    %v154 = vunpack.c.h.b16 %v66
    %v155 = vunpack.c.l.b16 %v67
    %v156 = vunpack.c.h.b16 %v67
    %v157 = vunpack.c.l.b16 %v68
    %v158 = vunpack.c.h.b16 %v68
    %v159 = vunpack.c.l.b16 %v69
    %v160 = vunpack.c.h.b16 %v69
    %v161 = vunpack.c.l.b16 %v70
    %v162 = vunpack.c.h.b16 %v70
    %v163 = vunpack.c.l.b16 %v71
    %v164 = vunpack.c.h.b16 %v71
    %v165 = vunpack.c.l.b16 %v72
    %v166 = vunpack.c.h.b16 %v72
    %v167 = vunpack.c.l.b16 %v73
    %v168 = vunpack.c.h.b16 %v73
    %v169 = vunpack.c.l.b16 %v74
    %v170 = vunpack.c.h.b16 %v74
    %v171 = vunpack.c.l.b16 %v75
    %v172 = vunpack.c.h.b16 %v75
    %v173 = vunpack.c.l.b16 %v76
    %v174 = vunpack.c.h.b16 %v76
    %v175 = vunpack.c.l.b16 %v77
    %v176 = vunpack.c.h.b16 %v77
    %v177 = vunpack.c.l.b16 %v78
    %v178 = vunpack.c.h.b16 %v78
    %v179 = vunpack.c.l.b16 %v79
    %v180 = vunpack.c.h.b16 %v79
    %v181 = vunpack.c.l.b16 %v80
    %v182 = vunpack.c.h.b16 %v80
    %v183 = vunpack.c.l.b16 %v81
    %v184 = vunpack.c.h.b16 %v81
    %v185 = vunpack.c.l.b16 %v82
    %v186 = vunpack.c.h.b16 %v82
    %v187 = vunpack.c.l.b16 %v83
    %v188 = vunpack.c.h.b16 %v83
    %v189 = vunpack.c.l.b16 %v84
    %v190 = vunpack.c.h.b16 %v84
    %v191 = vunpack.c.l.b16 %v85
    %v192 = vunpack.c.h.b16 %v85
    %v193 = vunpack.c.l.b16 %v86
    %v194 = vunpack.c.h.b16 %v86
    %v195 = vunpack.c.l.b16 %v87
    %v196 = vunpack.c.h.b16 %v87
    %v197 = vunpack.c.l.b16 %v88
    %v198 = vunpack.c.h.b16 %v88
    %v199 = vunpack.c.l.b16 %v89
    %v200 = vunpack.c.h.b16 %v89
    %v201 = vunpack.c.l.b16 %v90
    %v202 = vunpack.c.h.b16 %v90
    %v203 = vunpack.c.l.b16 %v91
    %v204 = vunpack.c.h.b16 %v91
    %v205 = vunpack.c.l.b16 %v92
    %v206 = vunpack.c.h.b16 %v92
    %v207 = vunpack.c.l.b16 %v93
    %v208 = vunpack.c.h.b16 %v93
    %v209 = vpack.c.b16 %v147, %v145
    %v210 = vpack.c.b16 %v148, %v146
    %v211 = vpack.c.b16 %v151, %v149
    %v212 = vpack.c.b16 %v152, %v150
    %v213 = vpack.c.b16 %v155, %v153
    %v214 = vpack.c.b16 %v156, %v154
    %v215 = vpack.c.b16 %v159, %v157
    %v216 = vpack.c.b16 %v160, %v158
    %v217 = vpack.c.b16 %v163, %v161
    %v218 = vpack.c.b16 %v164, %v162
    %v219 = vpack.c.b16 %v167, %v165
    %v220 = vpack.c.b16 %v168, %v166
    %v221 = vpack.c.b16 %v171, %v169
    %v222 = vpack.c.b16 %v172, %v170
    %v223 = vpack.c.b16 %v175, %v173
    %v224 = vpack.c.b16 %v176, %v174
    %v225 = vpack.c.b16 %v179, %v177
    %v226 = vpack.c.b16 %v180, %v178
    %v227 = vpack.c.b16 %v183, %v181
    %v228 = vpack.c.b16 %v184, %v182
    %v229 = vpack.c.b16 %v187, %v185
    %v230 = vpack.c.b16 %v188, %v186
    %v231 = vpack.c.b16 %v191, %v189
    %v232 = vpack.c.b16 %v192, %v190
    %v233 = vpack.c.b16 %v195, %v193
    %v234 = vpack.c.b16 %v196, %v194
    %v235 = vpack.c.b16 %v199, %v197
    %v236 = vpack.c.b16 %v200, %v198
    %v237 = vpack.c.b16 %v203, %v201
    %v238 = vpack.c.b16 %v204, %v202
    %v239 = vpack.c.b16 %v207, %v205
    %v240 = vpack.c.b16 %v208, %v206
    %273 = vmatprep.subr.bf16.mxu0 %v224
    %274 = vmatpush1.bf16.msra.mxu0 %v223
    %275 = vmatprep.subr.bf16.mxu0 %v222
    %276 = vmatpush1.bf16.msra.mxu0 %v221
    %277 = vmatprep.subr.bf16.mxu0 %v220
    %278 = vmatpush1.bf16.msra.mxu0 %v219
    %279 = vmatprep.subr.bf16.mxu0 %v218
    %280 = vmatpush1.bf16.msra.mxu0 %v217
    %281 = vmatprep.subr.bf16.mxu0 %v216
    %282 = vmatpush1.bf16.msra.mxu0 %v215
    %283 = vmatprep.subr.bf16.mxu0 %v214
    %284 = vmatpush1.bf16.msra.mxu0 %v213
    %285 = vmatprep.subr.bf16.mxu0 %v212
    %286 = vmatpush1.bf16.msra.mxu0 %v211
    %287 = vmatprep.subr.bf16.mxu0 %v210
    %288 = vmatpush1.bf16.msra.mxu0 %v209
    %289 = vmatprep.subr.bf16.mxu0 %v240
    %290 = vmatpush2.bf16.msra.mxu0 %v239
    %291 = vmatprep.subr.bf16.mxu0 %v238
    %292 = vmatpush2.bf16.msra.mxu0 %v237
    %293 = vmatprep.subr.bf16.mxu0 %v236
    %294 = vmatpush2.bf16.msra.mxu0 %v235
    %295 = vmatprep.subr.bf16.mxu0 %v234
    %296 = vmatpush2.bf16.msra.mxu0 %v233
    %297 = vmatprep.subr.bf16.mxu0 %v232
    %298 = vmatpush2.bf16.msra.mxu0 %v231
    %299 = vmatprep.subr.bf16.mxu0 %v230
    %300 = vmatpush2.bf16.msra.mxu0 %v229
    %301 = vmatprep.subr.bf16.mxu0 %v228
    %302 = vmatpush2.bf16.msra.mxu0 %v227
    %303 = vmatprep.subr.bf16.mxu0 %v226
    %304 = vmatpush2.bf16.msra.mxu0 %v225
    %305 = vmatprep.mubr.bf16.mxu0 %v110
    %306 = vmatmul.mubr.bf16.gmra.mxu0 %v109
    %v307 = vpop.f32.mrf.mxu0
    %v308 = vadd.f32 %v99, %v307
    %v309 = vpop.f32.mrf.mxu0
    %v310 = vadd.f32 %v103, %v309
    %v311 = vpop.f32.mrf.mxu0
    %v312 = vpop.f32.mrf.mxu0
    %313 = vdwg.mxu0
    %v314 = vmax.f32 %v308, 0.0
    %v315 = vmax.f32 %v310, 0.0
    %v316 = vpack.c.bf16 %v314, %v314
    %v317 = vpack.c.bf16 %v315, %v315
    %v318 = vld [vmem:[#allocation7] sm:$0xf]
    %v319 = vld [vmem:[#allocation7 + $0x4] sm:$0xf]
    %v320 = vld [vmem:[#allocation7 + $0x8] sm:$0xf]
    %v321 = vld [vmem:[#allocation7 + $0xc] sm:$0xf]
    %v322 = vld [vmem:[#allocation7 + $0x10] sm:$0xf]
    %v323 = vld [vmem:[#allocation7 + $0x14] sm:$0xf]
    %v324 = vld [vmem:[#allocation7 + $0x18] sm:$0xf]
    %v325 = vld [vmem:[#allocation7 + $0x1c] sm:$0xf]
    %v326 = vld [vmem:[#allocation7 + $0x20] sm:$0xf]
    %v327 = vld [vmem:[#allocation7 + $0x24] sm:$0xf]
    %v328 = vld [vmem:[#allocation7 + $0x28] sm:$0xf]
    %v329 = vld [vmem:[#allocation7 + $0x2c] sm:$0xf]
    %v330 = vld [vmem:[#allocation7 + $0x30] sm:$0xf]
    %v331 = vld [vmem:[#allocation7 + $0x34] sm:$0xf]
    %v332 = vld [vmem:[#allocation7 + $0x38] sm:$0xf]
    %v333 = vld [vmem:[#allocation7 + $0x3c] sm:$0xf]
    %v334 = vld [vmem:[#allocation7 + $0x40] sm:$0xf]
    %v335 = vld [vmem:[#allocation7 + $0x44] sm:$0xf]
    %v336 = vld [vmem:[#allocation7 + $0x48] sm:$0xf]
    %v337 = vld [vmem:[#allocation7 + $0x4c] sm:$0xf]
    %v338 = vld [vmem:[#allocation7 + $0x50] sm:$0xf]
    %v339 = vld [vmem:[#allocation7 + $0x54] sm:$0xf]
    %v340 = vld [vmem:[#allocation7 + $0x58] sm:$0xf]
    %v341 = vld [vmem:[#allocation7 + $0x5c] sm:$0xf]
    %v342 = vld [vmem:[#allocation7 + $0x60] sm:$0xf]
    %v343 = vld [vmem:[#allocation7 + $0x64] sm:$0xf]
    %v344 = vld [vmem:[#allocation7 + $0x68] sm:$0xf]
    %v345 = vld [vmem:[#allocation7 + $0x6c] sm:$0xf]
    %v346 = vld [vmem:[#allocation7 + $0x70] sm:$0xf]
    %v347 = vld [vmem:[#allocation7 + $0x74] sm:$0xf]
    %v348 = vld [vmem:[#allocation7 + $0x78] sm:$0xf]
    %v349 = vld [vmem:[#allocation7 + $0x7c] sm:$0xf]
    %v350 = vld [vmem:[%s4] sm:$0x1]
    %v352 = vlaneseq
    %v353 = vshrl.u32 %v352, 7
    %v354 = vsub.s32 0, %v353
    %v355 = vrot.slane %v350, %v354
    %v389 = vunpack.c.l.b16 %v318
    %v390 = vunpack.c.l.b16 %v319
    %v391 = vunpack.c.l.b16 %v320
    %v392 = vunpack.c.l.b16 %v321
    %v393 = vunpack.c.l.b16 %v322
    %v394 = vunpack.c.l.b16 %v323
    %v395 = vunpack.c.l.b16 %v324
    %v396 = vunpack.c.l.b16 %v325
    %v397 = vunpack.c.l.b16 %v326
    %v398 = vunpack.c.l.b16 %v327
    %v399 = vunpack.c.l.b16 %v328
    %v400 = vunpack.c.l.b16 %v329
    %v401 = vunpack.c.l.b16 %v330
    %v402 = vunpack.c.l.b16 %v331
    %v403 = vunpack.c.l.b16 %v332
    %v404 = vunpack.c.l.b16 %v333
    %v405 = vunpack.c.l.b16 %v334
    %v406 = vunpack.c.l.b16 %v335
    %v407 = vunpack.c.l.b16 %v336
    %v408 = vunpack.c.l.b16 %v337
    %v409 = vunpack.c.l.b16 %v338
    %v410 = vunpack.c.l.b16 %v339
    %v411 = vunpack.c.l.b16 %v340
    %v412 = vunpack.c.l.b16 %v341
    %v413 = vunpack.c.l.b16 %v342
    %v414 = vunpack.c.l.b16 %v343
    %v415 = vunpack.c.l.b16 %v344
    %v416 = vunpack.c.l.b16 %v345
    %v417 = vunpack.c.l.b16 %v346
    %v418 = vunpack.c.l.b16 %v347
    %v419 = vunpack.c.l.b16 %v348
    %v420 = vunpack.c.l.b16 %v349
    %v421 = vpack.c.b16 %v390, %v389
    %v422 = vpack.c.b16 %v392, %v391
    %v423 = vpack.c.b16 %v394, %v393
    %v424 = vpack.c.b16 %v396, %v395
    %v425 = vpack.c.b16 %v398, %v397
    %v426 = vpack.c.b16 %v400, %v399
    %v427 = vpack.c.b16 %v402, %v401
    %v428 = vpack.c.b16 %v404, %v403
    %v429 = vpack.c.b16 %v406, %v405
    %v430 = vpack.c.b16 %v408, %v407
    %v431 = vpack.c.b16 %v410, %v409
    %v432 = vpack.c.b16 %v412, %v411
    %v433 = vpack.c.b16 %v414, %v413
    %v434 = vpack.c.b16 %v416, %v415
    %v435 = vpack.c.b16 %v418, %v417
    %v436 = vpack.c.b16 %v420, %v419
    %453 = vmatprep.subr.bf16.mxu0 0
    %454 = vmatpush1.bf16.msra.mxu0 %v428
    %455 = vmatprep.subr.bf16.mxu0 0
    %456 = vmatpush1.bf16.msra.mxu0 %v427
    %457 = vmatprep.subr.bf16.mxu0 0
    %458 = vmatpush1.bf16.msra.mxu0 %v426
    %459 = vmatprep.subr.bf16.mxu0 0
    %460 = vmatpush1.bf16.msra.mxu0 %v425
    %461 = vmatprep.subr.bf16.mxu0 0
    %462 = vmatpush1.bf16.msra.mxu0 %v424
    %463 = vmatprep.subr.bf16.mxu0 0
    %464 = vmatpush1.bf16.msra.mxu0 %v423
    %465 = vmatprep.subr.bf16.mxu0 0
    %466 = vmatpush1.bf16.msra.mxu0 %v422
    %467 = vmatprep.subr.bf16.mxu0 0
    %468 = vmatpush1.bf16.msra.mxu0 %v421
    %469 = vmatprep.subr.bf16.mxu0 0
    %470 = vmatpush2.bf16.msra.mxu0 %v436
    %471 = vmatprep.subr.bf16.mxu0 0
    %472 = vmatpush2.bf16.msra.mxu0 %v435
    %473 = vmatprep.subr.bf16.mxu0 0
    %474 = vmatpush2.bf16.msra.mxu0 %v434
    %475 = vmatprep.subr.bf16.mxu0 0
    %476 = vmatpush2.bf16.msra.mxu0 %v433
    %477 = vmatprep.subr.bf16.mxu0 0
    %478 = vmatpush2.bf16.msra.mxu0 %v432
    %479 = vmatprep.subr.bf16.mxu0 0
    %480 = vmatpush2.bf16.msra.mxu0 %v431
    %481 = vmatprep.subr.bf16.mxu0 0
    %482 = vmatpush2.bf16.msra.mxu0 %v430
    %483 = vmatprep.subr.bf16.mxu0 0
    %484 = vmatpush2.bf16.msra.mxu0 %v429
    %485 = vmatprep.mubr.bf16.mxu0 %v317
    %486 = vmatmul.mubr.bf16.gmra.mxu0 %v316
    %v487 = vpop.f32.mrf.mxu0
    %v488 = vadd.f32 %v355, %v487
    %v489 = vpop.f32.mrf.mxu0
    %v490 = vpop.f32.mrf.mxu0
    %v491 = vpop.f32.mrf.mxu0
    %492 = vdwg.mxu0
    %493 = vst [vmem:[#allocation8] sm:$0xff] %v488
    // Predicated region
    $region34: #{tpu_custom_call.1} parent=1 // pred_check
      _
    $region35: #{tpu_custom_call.1} parent=1 // pred_check_branch
      %495 = sbr.rel (0) target = $region37
    $region36: #{tpu_custom_call.1} parent=1 // pred_region
      %s497 = ssub.s32 128, 128
      %498 = vsyncadd [#allocation4], %s497
      %s500 = sshll.u32 [#allocation8], 4
      %s501 = int_to_ptr.vmem [resolvable:$true] %s500
      %503 = dma.vmem_to_hbm [thread:$0]  %s501, 128, %s5, [#allocation4]
    $region37: #{tpu_custom_call.1} parent=1 // pred_fallthru
      _
    // Predicated region
    $region38: #{tpu_custom_call.1} parent=1 // pred_check
      _
    $region39: #{tpu_custom_call.1} parent=1 // pred_check_branch
      %505 = sbr.rel (0) target = $region41
    $region40: #{tpu_custom_call.1} parent=1 // pred_region
      %506 = dma.done [#allocation4], 128
    $region41: #{tpu_custom_call.1} parent=1 // pred_fallthru
      _
    %507 = vsyncpa [#allocation3], 1
    %508 = vsyncpa [#allocation6], 1
    %509 = vsyncpa [#allocation4], 1

</llo_original>
